<compile_context>
chip_gen: v7x
topology: tpu7x:2x2x1
jax: 0.10.0
libtpu: 0.0.40
codegen_flags: <defaults>
</compile_context>

<pallas_src>
import functools

import jax
import jax.numpy as jnp
from jax.experimental import pallas as pl
from jax.experimental.pallas import tpu as pltpu

EPS = 1e-5
_TILE_BYTES_CAP = 2 << 20   # ~2 MiB input tile: HBM-roofline DMAs, low VMEM use
_MIN_STEPS = 8              # >= 8 grid steps -> pipelining + megacore balance


def _layernorm_kernel(*refs, inv_d, valid_d, has_bias):
    # refs: (x_ref, w_ref[, b_ref], o_ref)
    if has_bias:
        x_ref, w_ref, b_ref, o_ref = refs
    else:
        x_ref, w_ref, o_ref = refs
        b_ref = None

    x = x_ref[...].astype(jnp.float32)
    # Mean from the raw sum (zero-padded lanes contribute nothing).
    mean = jnp.sum(x, axis=-1, keepdims=True) * inv_d
    centered = x - mean
    if valid_d != x.shape[-1]:
        # Lane-padded block: zero padded lanes so they don't pollute variance.
        lane = jax.lax.broadcasted_iota(jnp.int32, x.shape, x.ndim - 1)
        centered = jnp.where(lane < valid_d, centered, 0.0)
    # Two-pass variance: x is resident in VMEM, no cancellation issues.
    var = jnp.sum(centered * centered, axis=-1, keepdims=True) * inv_d
    inv = jax.lax.rsqrt(var + EPS)            # EUP slot (free-ish)
    y = centered * inv * w_ref[...].astype(jnp.float32)
    if has_bias:
        y = y + b_ref[...].astype(jnp.float32)
    o_ref[...] = y.astype(o_ref.dtype)


def _vmem_capacity_bytes():
    """Physical VMEM per TensorCore (exact HW query, with safe fallback)."""
    try:
        cap = int(pltpu.get_tpu_info().vmem_capacity_bytes)
        if cap > 0:
            return cap
    except Exception:
        pass
    return 64 << 20   # conservative fallback: v7x per-TensorCore VMEM


def _sublane_align(itemsize):
    # f32 -> 8, bf16 -> 16, int8/fp8 -> 32 (sublane packing).
    return max(8, 32 // max(1, int(itemsize)))


def _pick_block_rows(rows, d, itemsize, requested=None):
    align = _sublane_align(itemsize)
    rows_aligned = -(-rows // align) * align
    if requested is not None:
        tm = max(align, (int(requested) // align) * align)
        return min(tm, rows_aligned)
    # Cap the HBM tile at a few MiB: per-step overhead (~0.35 us) is already
    # amortized and the f32 working set stays small (v7x: 64 MiB VMEM).
    tm = max(align, (_TILE_BYTES_CAP // max(d * itemsize, 1)) // align * align)
    # Guarantee >= _MIN_STEPS grid steps when there are enough rows: keeps the
    # pipeline double-buffered and balances the 2 TensorCores on v7x.
    if rows_aligned >= _MIN_STEPS * align:
        tm = min(tm, max(align, (rows_aligned // _MIN_STEPS) // align * align))
    return min(tm, rows_aligned)


@functools.partial(jax.jit, static_argnames=("block_rows",))
def layer_norm(x, weight, bias=None, *, block_rows=None):
    """LayerNorm over the last axis of x. x: (..., D); weight/bias: (D,)."""
    orig_shape = x.shape
    d = int(orig_shape[-1])
    rows = 1
    for s in orig_shape[:-1]:
        rows *= int(s)
    has_bias = bias is not None

    # Lane-dense output: pad D up to a multiple of 128 when the overhead is
    # moderate (<= 2x); otherwise keep full-width (masked) stores.
    d_pad = -(-d // 128) * 128
    if d_pad == d or d_pad > 2 * d:
        d_pad = d

    x2 = x.reshape(rows, d)
    params = [weight.reshape(1, d)]
    if has_bias:
        params.append(bias.reshape(1, d))
    if d_pad != d:
        pad = ((0, 0), (0, d_pad - d))
        x2 = jnp.pad(x2, pad)
        params = [jnp.pad(p, pad) for p in params]

    itemsize = jnp.dtype(x.dtype).itemsize
    tm = _pick_block_rows(rows, d_pad, itemsize, block_rows)
    grid = (pl.cdiv(rows, tm),)   # masked tail block if tm doesn't divide rows

    x_spec = pl.BlockSpec((tm, d_pad), lambda i: (i, 0))
    p_spec = pl.BlockSpec((1, d_pad), lambda i: (0, 0))   # params stay resident
    o_spec = pl.BlockSpec((tm, d_pad), lambda i: (i, 0))

    # VMEM need: double-buffered in/out tiles + resident params + ~3 f32
    # temporaries (x_f32, centered, y).  Clamp to 7/8 of physical VMEM so the
    # limit is valid on v5e/v6e (128 MiB -> 112) and v7x (64 MiB -> 56).
    param_itemsize = jnp.dtype(weight.dtype).itemsize
    need = (4 * tm * d_pad * itemsize
            + 2 * len(params) * d_pad * param_itemsize
            + 3 * tm * d_pad * 4)
    cap = _vmem_capacity_bytes()
    vmem_limit = int(min(max(int(need * 1.25) + (2 << 20), 16 << 20),
                         (cap * 7) // 8))

    out = pl.pallas_call(
        functools.partial(_layernorm_kernel, inv_d=1.0 / d, valid_d=d,
                          has_bias=has_bias),
        out_shape=jax.ShapeDtypeStruct((rows, d_pad), x.dtype),
        grid_spec=pltpu.PrefetchScalarGridSpec(
            num_scalar_prefetch=0,
            grid=grid,
            in_specs=[x_spec] + [p_spec] * len(params),
            out_specs=o_spec,
        ),
        compiler_params=pltpu.CompilerParams(
            dimension_semantics=("parallel",),   # row axis shards across TCs
            vmem_limit_bytes=vmem_limit,
        ),
    )(x2, *params)

    if d_pad != d:
        out = out[:, :d]
    return out.reshape(orig_shape)


if __name__ == "__main__":
    B, T, D = 2, 8, 32
    key = jax.random.PRNGKey(0)
    k_x, k_w, k_b, k_x2 = jax.random.split(key, 4)

    x = jax.random.normal(k_x, (B, T, D), dtype=jnp.float32)
    weight = jnp.ones((D,), dtype=jnp.float32)   # module init: ones(ndim)
    bias = jnp.zeros((D,), dtype=jnp.float32)    # module init: zeros(ndim)

    def ref_ln(xx, w, b):
        xf = xx.astype(jnp.float32)
        mean = jnp.mean(xf, axis=-1, keepdims=True)
        var = jnp.mean((xf - mean) ** 2, axis=-1, keepdims=True)
        y = (xf - mean) * jax.lax.rsqrt(var + EPS) * w
        if b is not None:
            y = y + b
        return y.astype(xx.dtype)

    # bias=True path
    y = jax.block_until_ready(layer_norm(x, weight, bias))
    assert jnp.allclose(y, ref_ln(x, weight, bias), atol=1e-4, rtol=1e-4), \
        "mismatch vs reference (bias)"

    # bias=False path (module with bias=False -> bias is None)
    y_nb = jax.block_until_ready(layer_norm(x, weight, None))
    assert jnp.allclose(y_nb, ref_ln(x, weight, None), atol=1e-4, rtol=1e-4), \
        "mismatch vs reference (no bias)"

    # Non-trivial params + a row count that does NOT divide the tile, with an
    # explicit small block_rows to exercise the multi-block masked-tail path.
    w2 = jax.random.normal(k_w, (D,), dtype=jnp.float32)
    b2 = jax.random.normal(k_b, (D,), dtype=jnp.float32)
    x2 = jax.random.normal(k_x2, (3, 5, D), dtype=jnp.float32)
    y2 = jax.block_until_ready(layer_norm(x2, w2, b2, block_rows=8))
    assert jnp.allclose(y2, ref_ln(x2, w2, b2), atol=1e-4, rtol=1e-4), \
        "mismatch vs reference (ragged rows)"

    print("KERNEL_OK")
</pallas_src>

<mosaic_0001>
module attributes {stable_mosaic.version = 11 : i64} {
  func.func @_layernorm_kernel(%arg0: i32, %arg1: memref<16x32xf32, #tpu.memory_space<vmem>>, %arg2: memref<1x32xf32, #tpu.memory_space<vmem>>, %arg3: memref<1x32xf32, #tpu.memory_space<vmem>>, %arg4: memref<16x32xf32, #tpu.memory_space<vmem>>) attributes {dimension_semantics = [#tpu.dimension_semantics<parallel>], iteration_bounds = array<i64: 1>, scalar_prefetch = 0 : i64, scratch_operands = 0 : i64, tpu.core_type = #tpu.core_type<tc>, window_params = [{transform_indices = @transform_0, window_bounds = array<i64: 16, 32>}, {pipeline_mode = #tpu.pipeline_mode<synchronous>, transform_indices = @transform_1, window_bounds = array<i64: 1, 32>}, {pipeline_mode = #tpu.pipeline_mode<synchronous>, transform_indices = @transform_2, window_bounds = array<i64: 1, 32>}, {transform_indices = @transform_3, window_bounds = array<i64: 16, 32>}]} {
    %c0 = arith.constant 0 : index
    %c0_0 = arith.constant 0 : index
    %0 = vector.load %arg1[%c0, %c0_0] : memref<16x32xf32, #tpu.memory_space<vmem>>, vector<16x32xf32>
    %cst = arith.constant dense<0.000000e+00> : vector<16xf32>
    %1 = vector.multi_reduction <add>, %0, %cst [1] : vector<16x32xf32> to vector<16xf32>
    %2 = vector.shape_cast %1 : vector<16xf32> to vector<16x1xf32>
    %cst_1 = arith.constant 3.125000e-02 : f32
    %3 = vector.broadcast %cst_1 : f32 to vector<16x1xf32>
    %4 = arith.mulf %2, %3 : vector<16x1xf32>
    %5 = vector.broadcast %4 : vector<16x1xf32> to vector<16x32xf32>
    %6 = arith.subf %0, %5 : vector<16x32xf32>
    %7 = arith.mulf %6, %6 : vector<16x32xf32>
    %cst_2 = arith.constant dense<0.000000e+00> : vector<16xf32>
    %8 = vector.multi_reduction <add>, %7, %cst_2 [1] : vector<16x32xf32> to vector<16xf32>
    %9 = vector.shape_cast %8 : vector<16xf32> to vector<16x1xf32>
    %cst_3 = arith.constant 3.125000e-02 : f32
    %10 = vector.broadcast %cst_3 : f32 to vector<16x1xf32>
    %11 = arith.mulf %9, %10 : vector<16x1xf32>
    %cst_4 = arith.constant 9.99999974E-6 : f32
    %12 = vector.broadcast %cst_4 : f32 to vector<16x1xf32>
    %13 = arith.addf %11, %12 : vector<16x1xf32>
    %14 = math.rsqrt %13 : vector<16x1xf32>
    %15 = vector.broadcast %14 : vector<16x1xf32> to vector<16x32xf32>
    %16 = arith.mulf %6, %15 : vector<16x32xf32>
    %c0_5 = arith.constant 0 : index
    %c0_6 = arith.constant 0 : index
    %17 = vector.load %arg2[%c0_5, %c0_6] : memref<1x32xf32, #tpu.memory_space<vmem>>, vector<1x32xf32>
    %18 = vector.broadcast %17 : vector<1x32xf32> to vector<16x32xf32>
    %19 = arith.mulf %16, %18 : vector<16x32xf32>
    %c0_7 = arith.constant 0 : index
    %c0_8 = arith.constant 0 : index
    %20 = vector.load %arg3[%c0_7, %c0_8] : memref<1x32xf32, #tpu.memory_space<vmem>>, vector<1x32xf32>
    %21 = vector.broadcast %20 : vector<1x32xf32> to vector<16x32xf32>
    %22 = arith.addf %19, %21 : vector<16x32xf32>
    %c0_9 = arith.constant 0 : index
    %c0_10 = arith.constant 0 : index
    %23 = vector.load %arg4[%c0_9, %c0_10] : memref<16x32xf32, #tpu.memory_space<vmem>>, vector<16x32xf32>
    tpu.vector_store %arg4[%c0_9, %c0_10], %22 {strides = array<i32>} : memref<16x32xf32, #tpu.memory_space<vmem>>, vector<16x32xf32>,
    return
  }
  func.func @transform_0(%arg0: i32) -> (i32, i32) {
    %c0_i32 = arith.constant 0 : i32
    %c0_i32_0 = arith.constant 0 : i32
    return %arg0, %c0_i32 : i32, i32
  }
  func.func @transform_1(%arg0: i32) -> (i32, i32) {
    %c0_i32 = arith.constant 0 : i32
    %c0_i32_0 = arith.constant 0 : i32
    %c0_i32_1 = arith.constant 0 : i32
    return %c0_i32, %c0_i32_0 : i32, i32
  }
  func.func @transform_2(%arg0: i32) -> (i32, i32) {
    %c0_i32 = arith.constant 0 : i32
    %c0_i32_0 = arith.constant 0 : i32
    %c0_i32_1 = arith.constant 0 : i32
    return %c0_i32, %c0_i32_0 : i32, i32
  }
  func.func @transform_3(%arg0: i32) -> (i32, i32) {
    %c0_i32 = arith.constant 0 : i32
    %c0_i32_0 = arith.constant 0 : i32
    return %arg0, %c0_i32 : i32, i32
  }
}

</mosaic_0001>

<llo_original>
// kernel: layer_norm.1
$region0: #{layer_norm.1}
  #allocation0 [shape = 'u32[]', space=smem, size = 0x4, offset = 0x4, fixed_abs, tag = 'smem constant byte address 0x4 - core index']
  #allocation1 [shape = 'u32[144,128]{1,0:T(1,128)}', space=vmem, size = 0x12000, scoped, tag = 'internal scratch']
  %s0 = inlined_call_operand.hbm [shape: f32[16,32], index: 0, kind: input, shape index: {}]
  %s1 = inlined_call_operand.vmem [shape: f32[1,32], index: 1, kind: input, shape index: {}]
  %s2 = inlined_call_operand.vmem [shape: f32[1,32], index: 2, kind: input, shape index: {}]
  %s3 = inlined_call_operand.hbm [shape: f32[16,32], index: 3, kind: output, shape index: {}]
  %s4 = sld [smem:[#allocation0]]
  $region26: #{layer_norm.1} parent=0
    _
  %s6 = ssub.s32 1, %s4
  %s7 = scalar_select 0, %s6, %s4
  $region1: #{layer_norm.1} parent=0
    #allocation2 [shape = 'u8[8192]{0}', space=vmem, size = 0x2000, scoped, tag = 'input window, operand 0, single buffered']
    #allocation3 [shape = 's32[1]{0}', space=sflag, size = 0x4, scoped, tag = 'scoped memory for layer_norm.1']
    #allocation4 [shape = 's32[1]{0}', space=sflag, size = 0x4, scoped, tag = 'scoped memory for layer_norm.1']
    #allocation5 [shape = 'u8[8192]{0}', space=vmem, size = 0x2000, scoped, tag = 'output window, operand 0, single buffered']
    %8 = vsyncpa [#allocation3], 0
    %9 = vsyncpa [#allocation4], 0
    // Predicated region
    $region2: #{layer_norm.1} parent=1 // pred_check
      _
    $region3: #{layer_norm.1} parent=1 // pred_check_branch
      %11 = sbr.rel (0) target = $region5
    $region4: #{layer_norm.1} parent=1 // pred_region
      %s13 = ssub.s32 256, 256
      %14 = vsyncadd [#allocation3], %s13
      %s15 = sshll.u32 [#allocation2], 4
      %s16 = int_to_ptr.vmem [resolvable:$true] %s15
      %21 = dma.hbm_to_vmem [thread:$0]  %s0, 256, %s16, [#allocation3], 128, 128, 8
    $region5: #{layer_norm.1} parent=1 // pred_fallthru
      _
    // Predicated region
    $region6: #{layer_norm.1} parent=1 // pred_check
      _
    $region7: #{layer_norm.1} parent=1 // pred_check_branch
      %23 = sbr.rel (0) target = $region9
    $region8: #{layer_norm.1} parent=1 // pred_region
      _
    $region9: #{layer_norm.1} parent=1 // pred_fallthru
      _
    // Predicated region
    $region10: #{layer_norm.1} parent=1 // pred_check
      _
    $region11: #{layer_norm.1} parent=1 // pred_check_branch
      %25 = sbr.rel (0) target = $region13
    $region12: #{layer_norm.1} parent=1 // pred_region
      _
    $region13: #{layer_norm.1} parent=1 // pred_fallthru
      _
    // Predicated region
    $region14: #{layer_norm.1} parent=1 // pred_check
      _
    $region15: #{layer_norm.1} parent=1 // pred_check_branch
      %27 = sbr.rel (0) target = $region17
    $region16: #{layer_norm.1} parent=1 // pred_region
      %28 = dma.done [#allocation3], 256
    $region17: #{layer_norm.1} parent=1 // pred_fallthru
      _
    %v29 = vld [vmem:[#allocation2] sm:$0xff]
    %v30 = vld [vmem:[#allocation2 + $0x8] sm:$0xff]
    %vm31 = vcmask 261120
    %v32 = vsel %vm31, %v29, 0.0
    %33 = vadd.xlane.f32.xlu0 %v32
    %v34 = vpop.xlane.xlu0 %33
    %v35 = vsel %vm31, %v30, 0.0
    %36 = vadd.xlane.f32.xlu0 %v35
    %v37 = vpop.xlane.xlu0 %36
    %v38 = vmul.f32 %v34, 0.03125
    %v39 = vmul.f32 %v37, 0.03125
    %v40 = vsub.f32 %v29, %v38
    %v41 = vsub.f32 %v30, %v39
    %v42 = vmul.f32 %v40, %v40
    %v43 = vmul.f32 %v41, %v41
    %v44 = vsel %vm31, %v42, 0.0
    %45 = vadd.xlane.f32.xlu0 %v44
    %v46 = vpop.xlane.xlu0 %45
    %v47 = vsel %vm31, %v43, 0.0
    %48 = vadd.xlane.f32.xlu0 %v47
    %v49 = vpop.xlane.xlu0 %48
    %v50 = vmul.f32 %v46, 0.03125
    %v51 = vmul.f32 %v49, 0.03125
    %v52 = vadd.f32 %v50, 1e-05
    %v53 = vadd.f32 %v51, 1e-05
    %v54 = vrsqrt.pop %v52
    %v55 = vrsqrt.pop %v53
    %v56 = vmul.f32 %v40, %v54
    %v57 = vmul.f32 %v41, %v55
    %v58 = vld [vmem:[%s1] sm:$0x1]
    %v60 = vlaneseq
    %v61 = vshrl.u32 %v60, 7
    %v62 = vsub.s32 0, %v61
    %v63 = vrot.slane %v58, %v62
    %v65 = vmul.f32 %v56, %v63
    %v66 = vmul.f32 %v57, %v63
    %v67 = vld [vmem:[%s2] sm:$0x1]
    %v69 = vlaneseq
    %v70 = vshrl.u32 %v69, 7
    %v71 = vsub.s32 0, %v70
    %v72 = vrot.slane %v67, %v71
    %v74 = vadd.f32 %v65, %v72
    %v75 = vadd.f32 %v66, %v72
    %76 = vst.msk [vmem:[#allocation5] sm:$0xff] %vm31, %v74
    %77 = vst.msk [vmem:[#allocation5 + $0x8] sm:$0xff] %vm31, %v75
    // Predicated region
    $region18: #{layer_norm.1} parent=1 // pred_check
      _
    $region19: #{layer_norm.1} parent=1 // pred_check_branch
      %79 = sbr.rel (0) target = $region21
    $region20: #{layer_norm.1} parent=1 // pred_region
      %s81 = ssub.s32 256, 256
      %82 = vsyncadd [#allocation4], %s81
      %s83 = sshll.u32 [#allocation5], 4
      %s84 = int_to_ptr.vmem [resolvable:$true] %s83
      %89 = dma.vmem_to_hbm [thread:$0]  %s84, 256, %s3, [#allocation4], 128, 128, 8
    $region21: #{layer_norm.1} parent=1 // pred_fallthru
      _
    // Predicated region
    $region22: #{layer_norm.1} parent=1 // pred_check
      _
    $region23: #{layer_norm.1} parent=1 // pred_check_branch
      %91 = sbr.rel (0) target = $region25
    $region24: #{layer_norm.1} parent=1 // pred_region
      %92 = dma.done [#allocation4], 256
    $region25: #{layer_norm.1} parent=1 // pred_fallthru
      _
    %93 = vsyncpa [#allocation3], 1
    %94 = vsyncpa [#allocation4], 1

</llo_original>
